<compile_context>
chip_gen: v7x
topology: tpu7x:2x2x1
jax: 0.10.0
libtpu: 0.0.40
codegen_flags: <defaults>
</compile_context>

<pallas_src>
import functools

import jax
import jax.numpy as jnp
from jax.experimental import pallas as pl
from jax.experimental.pallas import tpu as pltpu

_MIB = 1024 * 1024


# ----------------------------------------------------------------- chip config
def _round_up(x, m):
    return (x + m - 1) // m * m


def _chip_config():
    """Best-effort (vmem_limit_bytes, is_v7x, bf16_vpu_ok). Never raises."""
    kind = ""
    try:
        kind = (jax.devices()[0].device_kind or "").lower()
    except Exception:
        pass
    is_v7x = ("v7" in kind) or ("7x" in kind)
    vmem_cap = None
    try:
        vmem_cap = int(getattr(pltpu.get_tpu_info(), "vmem_capacity_bytes", 0)) or None
    except Exception:
        vmem_cap = None
    if vmem_cap is None:
        vmem_cap = 64 * _MIB if is_v7x else 128 * _MIB
    is_v7x = is_v7x or (vmem_cap <= 64 * _MIB)
    # ~96 MiB of 128 (v5e/v6e), ~48 MiB of 64 (v7x): leave compiler headroom.
    vmem_limit = min(vmem_cap * 3 // 4, 100 * _MIB)
    # bf16 VPU/EUP exists on v6e/v7x only; default to f32 math when unknown.
    bf16_vpu_ok = any(t in kind for t in ("v6", "v7", "7x"))
    return vmem_limit, is_v7x, bf16_vpu_ok


def _block_b_cap(B, S, H, in_itemsize, method, low_precision_math,
                 vmem_limit, is_v7x):
    """Largest batch-tile that fits the per-generation VMEM budget, using the
    *padded* (lane/sublane) footprint rather than logical bytes."""
    Hp = _round_up(H, 128)
    sub_in = 8 if in_itemsize >= 4 else (16 if in_itemsize == 2 else 32)
    Sp_in = _round_up(S, sub_in)          # past tile sublane pad (input dtype)
    Sp8 = _round_up(S, 8)                 # f32 sublane pad
    math_bytes = 2 if (low_precision_math and in_itemsize == 2) else 4

    # Per-batch-row steady-state VMEM bytes (double-buffered where pipelined).
    row = 0
    row += 2 * Sp_in * Hp * in_itemsize   # past input tile
    row += 2 * Hp * in_itemsize           # dehy input tile
    row += 2 * 8 * Hp * 4                 # c output tile (Bt,1,H): sublane 1->8
    row += 2 * Sp8 * 128 * 4              # attn output tile (Bt,S,1): lane 1->128
    n_tmp = 4 if method == "luong_concat" else 2
    row += n_tmp * Sp8 * Hp * math_bytes  # tile-sized in-kernel temporaries

    # Resident weights (constant index maps) + fixed slack.
    if method == "luong_concat":
        w_bytes = 2 * (2 * _round_up(H, sub_in) * Hp + 2 * 8 * Hp) * in_itemsize
    elif method == "luong_general":
        w_bytes = 2 * _round_up(H, sub_in) * Hp * in_itemsize
    else:
        w_bytes = 0
    budget = vmem_limit - w_bytes - 4 * _MIB

    # HBM-streaming paths want big tiles (~8 MiB of `past` per step);
    # luong_concat keeps tile-sized intermediates live -> smaller tiles.
    target_past = (3 if method == "luong_concat" else 8) * _MIB
    past_row = Sp_in * Hp * in_itemsize
    cap = max(1, min(budget // row, target_past // past_row))
    if is_v7x and B >= 2:
        # Only v7x has 2 TensorCores; keep >= 2 "parallel" grid steps there.
        cap = min(cap, max(1, pl.cdiv(B, 2)))
    return int(cap)


def _choose_block_b(B, cap, prefer_even_tiles):
    """Largest divisor of B <= cap (so no padding copy is needed); on v7x
    prefer a divisor giving an even tile count so both cores get equal work.
    Returns (block_b, needs_pad)."""
    cap = max(1, min(cap, B))
    div = 1
    for d in range(cap, 0, -1):
        if B % d == 0:
            div = d
            break
    if prefer_even_tiles:
        for d in range(cap, 0, -1):
            if B % d == 0 and (B // d) % 2 == 0:
                if d >= max(1, div // 2):
                    div = d
                break
    if div >= max(1, cap // 2):           # lose at most 2x vs the VMEM-optimal cap
        return div, False
    return cap, True                      # pathological B: zero-pad the tail


# ----------------------------------------------------------------- kernel utils
def _softmax_over_seq(score, approx):
    # score: (Bt, S, 1) f32 -- softmax over the sequence (sublane) axis.
    m = jnp.max(score, axis=1, keepdims=True)            # (Bt, 1, 1)
    e = jnp.exp(score - m)                                # (Bt, S, 1)
    l = jnp.sum(e, axis=1, keepdims=True)                 # (Bt, 1, 1)
    return e * pl.reciprocal(l, approx=approx)            # (Bt, S, 1)


def _store_outputs(attn, past_m, c_ref, attn_ref, f32_math):
    # c[b,h] = sum_s attn[b,s] * past[b,s,h]: VPU multiply + sublane reduce.
    w = attn if f32_math else attn.astype(past_m.dtype)
    c = jnp.sum(w * past_m, axis=1, keepdims=True, dtype=jnp.float32)  # (Bt,1,H)
    c_ref[...] = c.astype(c_ref.dtype)
    attn_ref[...] = attn.astype(attn_ref.dtype)


# ----------------------------------------------------------------- kernels
def _kernel_dot(dehy_ref, past_ref, c_ref, attn_ref, *, approx, f32_math):
    past = past_ref[...]                                  # (Bt, S, H)
    dehy = dehy_ref[...]                                  # (Bt, H)
    past_m = past.astype(jnp.float32) if f32_math else past
    dehy_m = dehy.astype(jnp.float32) if f32_math else dehy
    # score[b,s] = <past[b,s,:], dehy[b,:]>  (VPU multiply + lane reduce).
    score = jnp.sum(past_m * dehy_m[:, None, :], axis=-1, keepdims=True,
                    dtype=jnp.float32)                    # (Bt, S, 1)
    attn = _softmax_over_seq(score, approx)
    _store_outputs(attn, past_m, c_ref, attn_ref, f32_math)


def _kernel_luong_general(dehy_ref, past_ref, w_in_ref, c_ref, attn_ref, *,
                          approx, f32_math):
    past = past_ref[...]                                  # (Bt, S, H)
    # Rewrite: (past @ w_in^T) . dehy == past . (dehy @ w_in)  -> H^2 + S*H work.
    v = jax.lax.dot_general(dehy_ref[...], w_in_ref[...], (((1,), (0,)), ((), ())),
                            preferred_element_type=jnp.float32)        # (Bt, H) f32
    past_m = past.astype(jnp.float32) if f32_math else past
    v_m = v if f32_math else v.astype(past.dtype)
    score = jnp.sum(past_m * v_m[:, None, :], axis=-1, keepdims=True,
                    dtype=jnp.float32)                    # (Bt, S, 1)
    attn = _softmax_over_seq(score, approx)
    _store_outputs(attn, past_m, c_ref, attn_ref, f32_math)


def _kernel_luong_concat(dehy_ref, past_ref, w_en_ref, b_en_ref, w_de_ref,
                         w_warp_ref, c_ref, attn_ref, *, approx, f32_math):
    bt, s, h = past_ref.shape
    past = past_ref[...]                                  # (Bt, S, H)
    # One big (Bt*S, H) @ (H, H) MXU matmul for the encoder-side projection.
    # NOTE: for real configs H should be a multiple of 128 to use the full MXU.
    en = jax.lax.dot_general(past.reshape(bt * s, h), w_en_ref[...],
                             (((1,), (1,)), ((), ())),
                             preferred_element_type=jnp.float32)
    # Decoder-side projection once per batch tile (M = Bt rows).
    de = jax.lax.dot_general(dehy_ref[...], w_de_ref[...], (((1,), (1,)), ((), ())),
                             preferred_element_type=jnp.float32)        # (Bt, H) f32
    # On v6e/v7x with bf16 inputs keep the VPU adds and the EUP tanh in bf16
    # (native rate, half the vreg/VMEM pressure); on v5e stay in f32.
    mdt = jnp.float32 if f32_math else past.dtype
    agg = jnp.tanh(en.astype(mdt).reshape(bt, s, h)
                   + de.astype(mdt)[:, None, :]
                   + b_en_ref[...].astype(mdt)[None, :, :])             # (Bt, S, H)
    # attn_warp_in: contract the H lane axis on the VPU, accumulate in f32.
    score = jnp.sum(agg * w_warp_ref[...].astype(mdt)[None, :, :],
                    axis=-1, keepdims=True, dtype=jnp.float32)          # (Bt, S, 1)
    attn = _softmax_over_seq(score, approx)
    past_m = past.astype(jnp.float32) if f32_math else past
    _store_outputs(attn, past_m, c_ref, attn_ref, f32_math)


# ----------------------------------------------------------------- wrapper
def attention_decoder_forward(dehy, past_hy, params, method, *, block_b=None):
    """Pallas forward of AttentionDecoder. Returns (c_decoder, attn) in f32."""
    method = method.lower()
    B, S, H = past_hy.shape

    in_dtype = past_hy.dtype
    itemsize = jnp.dtype(in_dtype).itemsize
    vmem_limit, is_v7x, bf16_vpu_ok = _chip_config()
    # bf16 element-wise math only where the VPU/EUP supports it (v6e/v7x).
    low_precision_math = bool(bf16_vpu_ok and in_dtype == jnp.bfloat16)
    f32_math = not low_precision_math
    # Only relax the softmax normalization on reduced-precision data.
    approx = jnp.dtype(in_dtype) != jnp.dtype(jnp.float32)

    if block_b is None:
        cap = _block_b_cap(B, S, H, itemsize, method, low_precision_math,
                           vmem_limit, is_v7x)
        block_b, needs_pad = _choose_block_b(B, cap, prefer_even_tiles=is_v7x)
    else:
        needs_pad = (B % block_b) != 0

    num_tiles = pl.cdiv(B, block_b)
    Bp = num_tiles * block_b

    # Inputs stream in their native dtype (no wrapper cast pass over past_hy);
    # only the tiny HxH weights are cast so the MXU runs at the input rate.
    dehy_in = dehy.astype(in_dtype)
    past_in = past_hy
    if needs_pad:
        # Rare fallback (batch with no usable divisor): zero-pad the tail;
        # zero rows give a finite (uniform) softmax and are sliced off below.
        dehy_in = jnp.pad(dehy_in, ((0, Bp - B), (0, 0)))
        past_in = jnp.pad(past_in, ((0, Bp - B), (0, 0), (0, 0)))

    def btile2(shape):
        return pl.BlockSpec(shape, lambda i: (i, 0))

    def btile3(shape):
        return pl.BlockSpec(shape, lambda i: (i, 0, 0))

    # Whole-array weight blocks with a constant index_map stay resident in
    # VMEM (no re-DMA between consecutive grid steps).
    def whole(shape):
        return pl.BlockSpec(shape, lambda i: (0, 0))

    in_specs = [btile2((block_b, H)), btile3((block_b, S, H))]
    args = [dehy_in, past_in]

    if method == 'luong_concat':
        kernel = functools.partial(_kernel_luong_concat, approx=approx,
                                   f32_math=f32_math)
        in_specs += [whole((H, H)), whole((1, H)), whole((H, H)), whole((1, H))]
        args += [params['w_en'].astype(in_dtype),
                 params['b_en'].reshape(1, H).astype(in_dtype),
                 params['w_de'].astype(in_dtype),
                 params['w_warp'].reshape(1, H).astype(in_dtype)]
    elif method == 'luong_general':
        kernel = functools.partial(_kernel_luong_general, approx=approx,
                                   f32_math=f32_math)
        in_specs += [whole((H, H))]
        args += [params['w_in'].astype(in_dtype)]
    else:
        kernel = functools.partial(_kernel_dot, approx=approx, f32_math=f32_math)

    out_shape = (jax.ShapeDtypeStruct((Bp, 1, H), jnp.float32),
                 jax.ShapeDtypeStruct((Bp, S, 1), jnp.float32))
    out_specs = [btile3((block_b, 1, H)), btile3((block_b, S, 1))]

    c3, attn3 = pl.pallas_call(
        kernel,
        out_shape=out_shape,
        grid_spec=pltpu.PrefetchScalarGridSpec(
            num_scalar_prefetch=0,
            grid=(num_tiles,),
            in_specs=in_specs,
            out_specs=out_specs),
        compiler_params=pltpu.CompilerParams(
            dimension_semantics=("parallel",),
            vmem_limit_bytes=int(vmem_limit)),
    )(*args)

    c = c3.reshape(Bp, H)
    attn = attn3.reshape(Bp, S)
    if Bp != B:
        c, attn = c[:B], attn[:B]
    return c, attn


# ----------------------------------------------------------------- pure-JAX ref
def ref_forward(dehy, past_hy, params, method):
    """Pure-JAX reference; mathematically identical to the PyTorch module."""
    method = method.lower()
    dehy32 = dehy.astype(jnp.float32)
    past32 = past_hy.astype(jnp.float32)
    if method == 'luong_concat':
        en = jnp.einsum('bsh,oh->bso', past_hy, params['w_en'],
                        preferred_element_type=jnp.float32)
        de = jnp.einsum('bh,oh->bo', dehy, params['w_de'],
                        preferred_element_type=jnp.float32)
        agg = jnp.tanh(en + de[:, None, :] + params['b_en'].astype(jnp.float32))
        attn = jnp.sum(agg * params['w_warp'][0].astype(jnp.float32), axis=-1)
    elif method == 'luong_general':
        # (past @ w_in^T) . dehy == past . (dehy @ w_in)
        v = jnp.einsum('bo,oh->bh', dehy, params['w_in'],
                       preferred_element_type=jnp.float32)
        attn = jnp.sum(past32 * v[:, None, :], axis=-1)
    else:
        attn = jnp.sum(past32 * dehy32[:, None, :], axis=-1)
    attn = jax.nn.softmax(attn, axis=1)
    c = jnp.sum(attn[:, :, None] * past32, axis=1)
    return c, attn


# ----------------------------------------------------------------- main
if __name__ == "__main__":
    key = jax.random.PRNGKey(0)
    k = jax.random.split(key, 8)

    def make_params(H):
        scale = 1.0 / jnp.sqrt(H)
        return {
            'w_en':   scale * jax.random.normal(k[2], (H, H), jnp.float32),
            'b_en':   scale * jax.random.normal(k[3], (H,), jnp.float32),
            'w_de':   scale * jax.random.normal(k[4], (H, H), jnp.float32),
            'w_warp': scale * jax.random.normal(k[5], (1, H), jnp.float32),
            'w_in':   scale * jax.random.normal(k[6], (H, H), jnp.float32),
        }

    ok = True
    METHODS = ('luong_concat', 'luong_general', 'dot')

    # --- f32 path: B=4 (divisor tiling) and B=3 (odd batch, single tile) ---
    S, H = 8, 32
    params = make_params(H)
    for B in (4, 3):
        dehy = jax.random.normal(k[0], (B, H), jnp.float32)
        past_hy = jax.random.normal(k[1], (B, S, H), jnp.float32)
        for method in METHODS:
            c, attn = attention_decoder_forward(dehy, past_hy, params, method)
            jax.block_until_ready((c, attn))
            c_ref, attn_ref = ref_forward(dehy, past_hy, params, method)
            ok &= bool(jnp.allclose(c, c_ref, atol=2e-5, rtol=2e-5))
            ok &= bool(jnp.allclose(attn, attn_ref, atol=2e-5, rtol=2e-5))

    # --- bf16 streaming path: inputs are natively bf16 (no wrapper cast);
    #     on v6e/v7x the VPU/EUP math runs in bf16, accumulation stays f32. ---
    def bf16_round(x):
        return x.astype(jnp.bfloat16).astype(jnp.float32)

    B = 4
    dehy_b = jax.random.normal(k[0], (B, H), jnp.float32).astype(jnp.bfloat16)
    past_b = jax.random.normal(k[1], (B, S, H), jnp.float32).astype(jnp.bfloat16)
    params_b = {n: bf16_round(v) for n, v in params.items()}
    for method in METHODS:
        c, attn = attention_decoder_forward(dehy_b, past_b, params, method)
        jax.block_until_ready((c, attn))
        c_ref, attn_ref = ref_forward(dehy_b.astype(jnp.float32),
                                      past_b.astype(jnp.float32),
                                      params_b, method)
        ok &= bool(jnp.allclose(c, c_ref, atol=1e-1, rtol=1e-1))
        ok &= bool(jnp.allclose(attn, attn_ref, atol=1e-1, rtol=1e-1))

    # --- larger MXU-aligned shape (exercises the block_b sizing heuristic) ---
    B2, S2, H2 = 8, 128, 128
    params2 = make_params(H2)
    dehy2 = jax.random.normal(k[0], (B2, H2), jnp.float32)
    past2 = jax.random.normal(k[1], (B2, S2, H2), jnp.float32)
    for method in METHODS:
        c, attn = attention_decoder_forward(dehy2, past2, params2, method)
        jax.block_until_ready((c, attn))
        c_ref, attn_ref = ref_forward(dehy2, past2, params2, method)
        ok &= bool(jnp.allclose(c, c_ref, atol=1e-3, rtol=1e-3))
        ok &= bool(jnp.allclose(attn, attn_ref, atol=1e-3, rtol=1e-3))

    print("KERNEL_OK" if ok else "MISMATCH")
</pallas_src>

<mosaic_0001>
module attributes {stable_mosaic.version = 11 : i64} {
  func.func @_kernel_luong_concat(%arg0: i32, %arg1: memref<4x32xf32, #tpu.memory_space<vmem>>, %arg2: memref<4x8x32xf32, #tpu.memory_space<vmem>>, %arg3: memref<32x32xf32, #tpu.memory_space<vmem>>, %arg4: memref<1x32xf32, #tpu.memory_space<vmem>>, %arg5: memref<32x32xf32, #tpu.memory_space<vmem>>, %arg6: memref<1x32xf32, #tpu.memory_space<vmem>>, %arg7: memref<4x1x32xf32, #tpu.memory_space<vmem>>, %arg8: memref<4x8x1xf32, #tpu.memory_space<vmem>>) attributes {dimension_semantics = [#tpu.dimension_semantics<parallel>], iteration_bounds = array<i64: 1>, scalar_prefetch = 0 : i64, scratch_operands = 0 : i64, tpu.core_type = #tpu.core_type<tc>, window_params = [{transform_indices = @transform_0, window_bounds = array<i64: 4, 32>}, {transform_indices = @transform_1, window_bounds = array<i64: 4, 8, 32>}, {pipeline_mode = #tpu.pipeline_mode<synchronous>, transform_indices = @transform_2, window_bounds = array<i64: 32, 32>}, {pipeline_mode = #tpu.pipeline_mode<synchronous>, transform_indices = @transform_3, window_bounds = array<i64: 1, 32>}, {pipeline_mode = #tpu.pipeline_mode<synchronous>, transform_indices = @transform_4, window_bounds = array<i64: 32, 32>}, {pipeline_mode = #tpu.pipeline_mode<synchronous>, transform_indices = @transform_5, window_bounds = array<i64: 1, 32>}, {transform_indices = @transform_6, window_bounds = array<i64: 4, 1, 32>}, {transform_indices = @transform_7, window_bounds = array<i64: 4, 8, 1>}]} {
    %c0 = arith.constant 0 : index
    %c0_0 = arith.constant 0 : index
    %c0_1 = arith.constant 0 : index
    %0 = vector.load %arg2[%c0, %c0_0, %c0_1] : memref<4x8x32xf32, #tpu.memory_space<vmem>>, vector<4x8x32xf32>
    %1 = vector.shape_cast %0 : vector<4x8x32xf32> to vector<32x32xf32>
    %c0_2 = arith.constant 0 : index
    %c0_3 = arith.constant 0 : index
    %2 = vector.load %arg3[%c0_2, %c0_3] : memref<32x32xf32, #tpu.memory_space<vmem>>, vector<32x32xf32>
    %cst = arith.constant dense<0.000000e+00> : vector<32x32xf32>
    %3 = tpu.matmul %1, %2, %cst {dimension_numbers = #tpu.dot_dimension_numbers<[1], [1], [0], [0], [0, 0, 1, 0], [], []>} : vector<32x32xf32>, vector<32x32xf32>, vector<32x32xf32> -> vector<32x32xf32>
    %c0_4 = arith.constant 0 : index
    %c0_5 = arith.constant 0 : index
    %4 = vector.load %arg1[%c0_4, %c0_5] : memref<4x32xf32, #tpu.memory_space<vmem>>, vector<4x32xf32>
    %c0_6 = arith.constant 0 : index
    %c0_7 = arith.constant 0 : index
    %5 = vector.load %arg5[%c0_6, %c0_7] : memref<32x32xf32, #tpu.memory_space<vmem>>, vector<32x32xf32>
    %cst_8 = arith.constant dense<0.000000e+00> : vector<4x32xf32>
    %6 = tpu.matmul %4, %5, %cst_8 {dimension_numbers = #tpu.dot_dimension_numbers<[1], [1], [0], [0], [0, 0, 1, 0], [], []>} : vector<4x32xf32>, vector<32x32xf32>, vector<4x32xf32> -> vector<4x32xf32>
    %7 = vector.shape_cast %3 : vector<32x32xf32> to vector<4x8x32xf32>
    %8 = vector.shape_cast %6 : vector<4x32xf32> to vector<4x1x32xf32>
    %9 = vector.broadcast %8 : vector<4x1x32xf32> to vector<4x8x32xf32>
    %10 = arith.addf %7, %9 : vector<4x8x32xf32>
    %c0_9 = arith.constant 0 : index
    %c0_10 = arith.constant 0 : index
    %11 = vector.load %arg4[%c0_9, %c0_10] : memref<1x32xf32, #tpu.memory_space<vmem>>, vector<1x32xf32>
    %12 = vector.shape_cast %11 : vector<1x32xf32> to vector<1x1x32xf32>
    %13 = vector.broadcast %12 : vector<1x1x32xf32> to vector<4x8x32xf32>
    %14 = arith.addf %10, %13 : vector<4x8x32xf32>
    %15 = math.tanh %14 : vector<4x8x32xf32>
    %c0_11 = arith.constant 0 : index
    %c0_12 = arith.constant 0 : index
    %16 = vector.load %arg6[%c0_11, %c0_12] : memref<1x32xf32, #tpu.memory_space<vmem>>, vector<1x32xf32>
    %17 = vector.shape_cast %16 : vector<1x32xf32> to vector<1x1x32xf32>
    %18 = vector.broadcast %17 : vector<1x1x32xf32> to vector<4x8x32xf32>
    %19 = arith.mulf %15, %18 : vector<4x8x32xf32>
    %cst_13 = arith.constant dense<0.000000e+00> : vector<4x8xf32>
    %20 = vector.multi_reduction <add>, %19, %cst_13 [2] : vector<4x8x32xf32> to vector<4x8xf32>
    %21 = vector.shape_cast %20 : vector<4x8xf32> to vector<4x8x1xf32>
    %cst_14 = arith.constant dense<0xFF800000> : vector<4x1xf32>
    %22 = vector.multi_reduction <maximumf>, %21, %cst_14 [1] : vector<4x8x1xf32> to vector<4x1xf32>
    %23 = vector.shape_cast %22 : vector<4x1xf32> to vector<4x1x1xf32>
    %24 = vector.broadcast %23 : vector<4x1x1xf32> to vector<4x8x1xf32>
    %25 = arith.subf %21, %24 : vector<4x8x1xf32>
    %26 = math.exp %25 : vector<4x8x1xf32>
    %cst_15 = arith.constant dense<0.000000e+00> : vector<4x1xf32>
    %27 = vector.multi_reduction <add>, %26, %cst_15 [1] : vector<4x8x1xf32> to vector<4x1xf32>
    %28 = vector.shape_cast %27 : vector<4x1xf32> to vector<4x1x1xf32>
    %29 = tpu.reciprocal %28 : vector<4x1x1xf32> -> vector<4x1x1xf32>
    %30 = vector.broadcast %29 : vector<4x1x1xf32> to vector<4x8x1xf32>
    %31 = arith.mulf %26, %30 : vector<4x8x1xf32>
    %32 = vector.broadcast %31 : vector<4x8x1xf32> to vector<4x8x32xf32>
    %33 = arith.mulf %32, %0 : vector<4x8x32xf32>
    %cst_16 = arith.constant dense<0.000000e+00> : vector<4x32xf32>
    %34 = vector.multi_reduction <add>, %33, %cst_16 [1] : vector<4x8x32xf32> to vector<4x32xf32>
    %35 = vector.shape_cast %34 : vector<4x32xf32> to vector<4x1x32xf32>
    %c0_17 = arith.constant 0 : index
    %c0_18 = arith.constant 0 : index
    %c0_19 = arith.constant 0 : index
    %36 = vector.load %arg7[%c0_17, %c0_18, %c0_19] : memref<4x1x32xf32, #tpu.memory_space<vmem>>, vector<4x1x32xf32>
    tpu.vector_store %arg7[%c0_17, %c0_18, %c0_19], %35 {strides = array<i32>} : memref<4x1x32xf32, #tpu.memory_space<vmem>>, vector<4x1x32xf32>,
    %c0_20 = arith.constant 0 : index
    %c0_21 = arith.constant 0 : index
    %c0_22 = arith.constant 0 : index
    %37 = vector.load %arg8[%c0_20, %c0_21, %c0_22] : memref<4x8x1xf32, #tpu.memory_space<vmem>>, vector<4x8x1xf32>
    tpu.vector_store %arg8[%c0_20, %c0_21, %c0_22], %31 {strides = array<i32>} : memref<4x8x1xf32, #tpu.memory_space<vmem>>, vector<4x8x1xf32>,
    return
  }
  func.func @transform_0(%arg0: i32) -> (i32, i32) {
    %c0_i32 = arith.constant 0 : i32
    %c0_i32_0 = arith.constant 0 : i32
    return %arg0, %c0_i32 : i32, i32
  }
  func.func @transform_1(%arg0: i32) -> (i32, i32, i32) {
    %c0_i32 = arith.constant 0 : i32
    %c0_i32_0 = arith.constant 0 : i32
    %c0_i32_1 = arith.constant 0 : i32
    return %arg0, %c0_i32, %c0_i32_0 : i32, i32, i32
  }
  func.func @transform_2(%arg0: i32) -> (i32, i32) {
    %c0_i32 = arith.constant 0 : i32
    %c0_i32_0 = arith.constant 0 : i32
    %c0_i32_1 = arith.constant 0 : i32
    return %c0_i32, %c0_i32_0 : i32, i32
  }
  func.func @transform_3(%arg0: i32) -> (i32, i32) {
    %c0_i32 = arith.constant 0 : i32
    %c0_i32_0 = arith.constant 0 : i32
    %c0_i32_1 = arith.constant 0 : i32
    return %c0_i32, %c0_i32_0 : i32, i32
  }
  func.func @transform_4(%arg0: i32) -> (i32, i32) {
    %c0_i32 = arith.constant 0 : i32
    %c0_i32_0 = arith.constant 0 : i32
    %c0_i32_1 = arith.constant 0 : i32
    return %c0_i32, %c0_i32_0 : i32, i32
  }
  func.func @transform_5(%arg0: i32) -> (i32, i32) {
    %c0_i32 = arith.constant 0 : i32
    %c0_i32_0 = arith.constant 0 : i32
    %c0_i32_1 = arith.constant 0 : i32
    return %c0_i32, %c0_i32_0 : i32, i32
  }
  func.func @transform_6(%arg0: i32) -> (i32, i32, i32) {
    %c0_i32 = arith.constant 0 : i32
    %c0_i32_0 = arith.constant 0 : i32
    %c0_i32_1 = arith.constant 0 : i32
    return %arg0, %c0_i32, %c0_i32_0 : i32, i32, i32
  }
  func.func @transform_7(%arg0: i32) -> (i32, i32, i32) {
    %c0_i32 = arith.constant 0 : i32
    %c0_i32_0 = arith.constant 0 : i32
    %c0_i32_1 = arith.constant 0 : i32
    return %arg0, %c0_i32, %c0_i32_0 : i32, i32, i32
  }
}

</mosaic_0001>

<llo_original>
// kernel: tpu_custom_call.1
$region0: #{tpu_custom_call.1}
  #allocation0 [shape = 'u32[]', space=smem, size = 0x4, offset = 0x4, fixed_abs, tag = 'smem constant byte address 0x4 - core index']
  #allocation1 [shape = 'u32[144,128]{1,0:T(1,128)}', space=vmem, size = 0x12000, scoped, tag = 'internal scratch']
  %s0 = inlined_call_operand.hbm [shape: f32[4,32], index: 0, kind: input, shape index: {}]
  %s1 = inlined_call_operand.hbm [shape: f32[4,8,32], index: 1, kind: input, shape index: {}]
  %s2 = inlined_call_operand.hbm [shape: f32[32,32], index: 2, kind: input, shape index: {}]
  %s3 = inlined_call_operand.hbm [shape: f32[1,32], index: 3, kind: input, shape index: {}]
  %s4 = inlined_call_operand.hbm [shape: f32[32,32], index: 4, kind: input, shape index: {}]
  %s5 = inlined_call_operand.hbm [shape: f32[1,32], index: 5, kind: input, shape index: {}]
  %s6 = inlined_call_operand.hbm [shape: f32[4,1,32], index: 6, kind: output, shape index: {0}]
  %s7 = inlined_call_operand.hbm [shape: f32[4,8,1], index: 7, kind: output, shape index: {1}]
  %8 = xla_tuple %s6, %s7
  %s9 = sld [smem:[#allocation0]]
  $region66: #{tpu_custom_call.1} parent=0
    _
  %s11 = ssub.s32 1, %s9
  %s12 = scalar_select 0, %s11, %s9
  $region1: #{tpu_custom_call.1} parent=0
    #allocation2 [shape = 'u8[2048]{0}', space=vmem, size = 0x800, scoped, tag = 'input window, operand 0, single buffered']
    #allocation3 [shape = 's32[1]{0}', space=sflag, size = 0x4, scoped, tag = 'scoped memory for tpu_custom_call.1']
    #allocation4 [shape = 's32[1]{0}', space=sflag, size = 0x4, scoped, tag = 'scoped memory for tpu_custom_call.1']
    #allocation5 [shape = 'u8[16384]{0}', space=vmem, size = 0x4000, scoped, tag = 'input window, operand 1, single buffered']
    #allocation6 [shape = 's32[1]{0}', space=sflag, size = 0x4, scoped, tag = 'scoped memory for tpu_custom_call.1']
    #allocation7 [shape = 'u8[16384]{0}', space=vmem, size = 0x4000, scoped, tag = 'input window, operand 2, single buffered']
    #allocation8 [shape = 'u8[512]{0}', space=vmem, size = 0x400, scoped, tag = 'input window, operand 3, single buffered']
    #allocation9 [shape = 's32[1]{0}', space=sflag, size = 0x4, scoped, tag = 'scoped memory for tpu_custom_call.1']
    #allocation10 [shape = 'u8[16384]{0}', space=vmem, size = 0x4000, scoped, tag = 'input window, operand 4, single buffered']
    #allocation11 [shape = 'u8[512]{0}', space=vmem, size = 0x400, scoped, tag = 'input window, operand 5, single buffered']
    #allocation12 [shape = 's32[1]{0}', space=sflag, size = 0x4, scoped, tag = 'scoped memory for tpu_custom_call.1']
    #allocation13 [shape = 'u8[2048]{0}', space=vmem, size = 0x800, scoped, tag = 'output window, operand 0, single buffered']
    #allocation14 [shape = 'u8[16384]{0}', space=vmem, size = 0x4000, scoped, tag = 'output window, operand 1, single buffered']
    #allocation15 [shape = 's32[1]{0}', space=sflag, size = 0x4, scoped, tag = 'scoped memory for tpu_custom_call.1']
    %13 = vsyncpa [#allocation3], 0
    %14 = vsyncpa [#allocation6], 0
    %15 = vsyncpa [#allocation9], 0
    %16 = vsyncpa [#allocation12], 0
    %17 = vsyncpa [#allocation4], 0
    %18 = vsyncpa [#allocation15], 0
    // Predicated region
    $region2: #{tpu_custom_call.1} parent=1 // pred_check
      _
    $region3: #{tpu_custom_call.1} parent=1 // pred_check_branch
      %20 = sbr.rel (0) target = $region5
    $region4: #{tpu_custom_call.1} parent=1 // pred_region
      %s22 = ssub.s32 64, 64
      %23 = vsyncadd [#allocation3], %s22
      %s25 = sshll.u32 [#allocation2], 4
      %s26 = int_to_ptr.vmem [resolvable:$true] %s25
      %28 = dma.hbm_to_vmem [thread:$0]  %s0, 64, %s26, [#allocation3]
    $region5: #{tpu_custom_call.1} parent=1 // pred_fallthru
      _
    // Predicated region
    $region6: #{tpu_custom_call.1} parent=1 // pred_check
      _
    $region7: #{tpu_custom_call.1} parent=1 // pred_check_branch
      %30 = sbr.rel (0) target = $region9
    $region8: #{tpu_custom_call.1} parent=1 // pred_region
      %s32 = ssub.s32 512, 512
      %33 = vsyncadd [#allocation6], %s32
      %s34 = sshll.u32 [#allocation5], 4
      %s35 = int_to_ptr.vmem [resolvable:$true] %s34
      %40 = dma.hbm_to_vmem [thread:$0]  %s1, 512, %s35, [#allocation6], 128, 128, 8
    $region9: #{tpu_custom_call.1} parent=1 // pred_fallthru
      _
    // Predicated region
    $region10: #{tpu_custom_call.1} parent=1 // pred_check
      _
    $region11: #{tpu_custom_call.1} parent=1 // pred_check_branch
      %42 = sbr.rel (0) target = $region13
    $region12: #{tpu_custom_call.1} parent=1 // pred_region
      %s44 = ssub.s32 512, 512
      %45 = vsyncadd [#allocation6], %s44
      %s46 = sshll.u32 [#allocation7], 4
      %s47 = int_to_ptr.vmem [resolvable:$true] %s46
      %52 = dma.hbm_to_vmem [thread:$0]  %s2, 512, %s47, [#allocation6], 128, 128, 8
    $region13: #{tpu_custom_call.1} parent=1 // pred_fallthru
      _
    // Predicated region
    $region14: #{tpu_custom_call.1} parent=1 // pred_check
      _
    $region15: #{tpu_custom_call.1} parent=1 // pred_check_branch
      %54 = sbr.rel (0) target = $region17
    $region16: #{tpu_custom_call.1} parent=1 // pred_region
      %s56 = ssub.s32 16, 16
      %57 = vsyncadd [#allocation9], %s56
      %s59 = sshll.u32 [#allocation8], 4
      %s60 = int_to_ptr.vmem [resolvable:$true] %s59
      %62 = dma.hbm_to_vmem [thread:$0]  %s3, 16, %s60, [#allocation9]
    $region17: #{tpu_custom_call.1} parent=1 // pred_fallthru
      _
    // Predicated region
    $region18: #{tpu_custom_call.1} parent=1 // pred_check
      _
    $region19: #{tpu_custom_call.1} parent=1 // pred_check_branch
      %64 = sbr.rel (0) target = $region21
    $region20: #{tpu_custom_call.1} parent=1 // pred_region
      %s66 = ssub.s32 512, 512
      %67 = vsyncadd [#allocation9], %s66
      %s68 = sshll.u32 [#allocation10], 4
      %s69 = int_to_ptr.vmem [resolvable:$true] %s68
      %74 = dma.hbm_to_vmem [thread:$0]  %s4, 512, %s69, [#allocation9], 128, 128, 8
    $region21: #{tpu_custom_call.1} parent=1 // pred_fallthru
      _
    // Predicated region
    $region22: #{tpu_custom_call.1} parent=1 // pred_check
      _
    $region23: #{tpu_custom_call.1} parent=1 // pred_check_branch
      %76 = sbr.rel (0) target = $region25
    $region24: #{tpu_custom_call.1} parent=1 // pred_region
      %s78 = ssub.s32 16, 16
      %79 = vsyncadd [#allocation12], %s78
      %s81 = sshll.u32 [#allocation11], 4
      %s82 = int_to_ptr.vmem [resolvable:$true] %s81
      %84 = dma.hbm_to_vmem [thread:$0]  %s5, 16, %s82, [#allocation12]
    $region25: #{tpu_custom_call.1} parent=1 // pred_fallthru
      _
    // Predicated region
    $region26: #{tpu_custom_call.1} parent=1 // pred_check
      _
    $region27: #{tpu_custom_call.1} parent=1 // pred_check_branch
      %86 = sbr.rel (0) target = $region29
    $region28: #{tpu_custom_call.1} parent=1 // pred_region
      %87 = dma.done [#allocation3], 64
    $region29: #{tpu_custom_call.1} parent=1 // pred_fallthru
      _
    // Predicated region
    $region30: #{tpu_custom_call.1} parent=1 // pred_check
      _
    $region31: #{tpu_custom_call.1} parent=1 // pred_check_branch
      %89 = sbr.rel (0) target = $region33
    $region32: #{tpu_custom_call.1} parent=1 // pred_region
      %90 = dma.done [#allocation6], 512
    $region33: #{tpu_custom_call.1} parent=1 // pred_fallthru
      _
    // Predicated region
    $region34: #{tpu_custom_call.1} parent=1 // pred_check
      _
    $region35: #{tpu_custom_call.1} parent=1 // pred_check_branch
      %92 = sbr.rel (0) target = $region37
    $region36: #{tpu_custom_call.1} parent=1 // pred_region
      %93 = dma.done [#allocation6], 512
    $region37: #{tpu_custom_call.1} parent=1 // pred_fallthru
      _
    // Predicated region
    $region38: #{tpu_custom_call.1} parent=1 // pred_check
      _
    $region39: #{tpu_custom_call.1} parent=1 // pred_check_branch
      %95 = sbr.rel (0) target = $region41
    $region40: #{tpu_custom_call.1} parent=1 // pred_region
      %96 = dma.done [#allocation9], 16
    $region41: #{tpu_custom_call.1} parent=1 // pred_fallthru
      _
    // Predicated region
    $region42: #{tpu_custom_call.1} parent=1 // pred_check
      _
    $region43: #{tpu_custom_call.1} parent=1 // pred_check_branch
      %98 = sbr.rel (0) target = $region45
    $region44: #{tpu_custom_call.1} parent=1 // pred_region
      %99 = dma.done [#allocation9], 512
    $region45: #{tpu_custom_call.1} parent=1 // pred_fallthru
      _
    // Predicated region
    $region46: #{tpu_custom_call.1} parent=1 // pred_check
      _
    $region47: #{tpu_custom_call.1} parent=1 // pred_check_branch
      %101 = sbr.rel (0) target = $region49
    $region48: #{tpu_custom_call.1} parent=1 // pred_region
      %102 = dma.done [#allocation12], 16
    $region49: #{tpu_custom_call.1} parent=1 // pred_fallthru
      _
    %v103 = vld [vmem:[#allocation5] sm:$0xff]
    %v104 = vld [vmem:[#allocation5 + $0x8] sm:$0xff]
    %v105 = vld [vmem:[#allocation5 + $0x10] sm:$0xff]
    %v106 = vld [vmem:[#allocation5 + $0x18] sm:$0xff]
    %v107 = vld [vmem:[#allocation7] sm:$0xff]
    %v108 = vld [vmem:[#allocation7 + $0x8] sm:$0xff]
    %v109 = vld [vmem:[#allocation7 + $0x10] sm:$0xff]
    %v110 = vld [vmem:[#allocation7 + $0x18] sm:$0xff]
    %vm111 = vcmask 261120
    %v113 = vsel %vm111, %v103, 0
    %v116 = vsel %vm111, %v104, 0
    %v119 = vsel %vm111, %v105, 0
    %v122 = vsel %vm111, %v106, 0
    %v125 = vsel %vm111, %v107, 0
    %v128 = vsel %vm111, %v108, 0
    %v131 = vsel %vm111, %v109, 0
    %v134 = vsel %vm111, %v110, 0
    %136 = vmatprep.subr.mxu0 0.0
    %137 = vmatpush1.xpose.msra.mxu0 %v125
    %138 = vmatprep.subr.mxu0 0.0
    %139 = vmatpush1.xpose.msra.mxu0 %v128
    %140 = vmatprep.subr.mxu0 0.0
    %141 = vmatpush1.xpose.msra.mxu0 %v131
    %142 = vmatprep.subr.mxu0 0.0
    %143 = vmatpush1.xpose.msra.mxu0 %v134
    %144 = vmatprep.subr.mxu0 0.0
    %145 = vmatpush1.xpose.msra.mxu0 0.0
    %146 = vmatprep.subr.mxu0 0.0
    %147 = vmatpush1.xpose.msra.mxu0 0.0
    %148 = vmatprep.subr.mxu0 0.0
    %149 = vmatpush1.xpose.msra.mxu0 0.0
    %150 = vmatprep.subr.mxu0 0.0
    %151 = vmatpush1.xpose.msra.mxu0 0.0
    %152 = vmatprep.subr.mxu0 0.0
    %153 = vmatpush1.xpose.msra.mxu0 0.0
    %154 = vmatprep.subr.mxu0 0.0
    %155 = vmatpush1.xpose.msra.mxu0 0.0
    %156 = vmatprep.subr.mxu0 0.0
    %157 = vmatpush1.xpose.msra.mxu0 0.0
    %158 = vmatprep.subr.mxu0 0.0
    %159 = vmatpush1.xpose.msra.mxu0 0.0
    %160 = vmatprep.subr.mxu0 0.0
    %161 = vmatpush1.xpose.msra.mxu0 0.0
    %162 = vmatprep.subr.mxu0 0.0
    %163 = vmatpush1.xpose.msra.mxu0 0.0
    %164 = vmatprep.subr.mxu0 0.0
    %165 = vmatpush1.xpose.msra.mxu0 0.0
    %166 = vmatprep.subr.mxu0 0.0
    %167 = vmatpush1.xpose.msra.mxu0 0.0
    %168 = vmatprep.subr.mxu0 0.0
    %169 = vmatpush1.xpose.msra.mxu0 0.0
    %170 = vmatprep.subr.mxu0 0.0
    %171 = vmatpush1.xpose.msra.mxu0 0.0
    %172 = vmatprep.subr.mxu0 0.0
    %173 = vmatpush1.xpose.msra.mxu0 0.0
    %174 = vmatprep.subr.mxu0 0.0
    %175 = vmatpush1.xpose.msra.mxu0 0.0
    %176 = vmatprep.subr.mxu0 0.0
    %177 = vmatpush1.xpose.msra.mxu0 0.0
    %178 = vmatprep.subr.mxu0 0.0
    %179 = vmatpush1.xpose.msra.mxu0 0.0
    %180 = vmatprep.subr.mxu0 0.0
    %181 = vmatpush1.xpose.msra.mxu0 0.0
    %182 = vmatprep.subr.mxu0 0.0
    %183 = vmatpush1.xpose.msra.mxu0 0.0
    %184 = vmatprep.subr.mxu0 0.0
    %185 = vmatpush1.xpose.msra.mxu0 0.0
    %186 = vmatprep.subr.mxu0 0.0
    %187 = vmatpush1.xpose.msra.mxu0 0.0
    %188 = vmatprep.subr.mxu0 0.0
    %189 = vmatpush1.xpose.msra.mxu0 0.0
    %190 = vmatprep.subr.mxu0 0.0
    %191 = vmatpush1.xpose.msra.mxu0 0.0
    %192 = vmatprep.subr.mxu0 0.0
    %193 = vmatpush1.xpose.msra.mxu0 0.0
    %194 = vmatprep.subr.mxu0 0.0
    %195 = vmatpush1.xpose.msra.mxu0 0.0
    %196 = vmatprep.subr.mxu0 0.0
    %197 = vmatpush1.xpose.msra.mxu0 0.0
    %198 = vmatprep.subr.mxu0 0.0
    %199 = vmatpush1.xpose.msra.mxu0 0.0
    %200 = vmatprep.mubr.f32.mxu0 0.0
    %201 = vmatmul.mubr.f32.gmra.mrb[0].mxu0 %v113
    %v202 = vpop.f32.mrb[0].mxu0
    %v203 = vadd.f32 0.0, %v202
    %v204 = vpop.f32.mrb[0].mxu0
    %205 = vmatprep.mubr.f32.mxu0 0.0
    %206 = vmatmul.mubr.f32.gmra.mrb[0].mxu0 %v116
    %v207 = vpop.f32.mrb[0].mxu0
    %v208 = vadd.f32 0.0, %v207
    %v209 = vpop.f32.mrb[0].mxu0
    %210 = vmatprep.mubr.f32.mxu0 0.0
    %211 = vmatmul.mubr.f32.gmra.mrb[0].mxu0 %v119
    %v212 = vpop.f32.mrb[0].mxu0
    %v213 = vadd.f32 0.0, %v212
    %v214 = vpop.f32.mrb[0].mxu0
    %215 = vmatprep.mubr.f32.mxu0 0.0
    %216 = vmatmul.mubr.f32.gmra.mrb[0].mxu0 %v122
    %v217 = vpop.f32.mrb[0].mxu0
    %v218 = vadd.f32 0.0, %v217
    %v219 = vpop.f32.mrb[0].mxu0
    %220 = vdwg.mxu0
    %v221 = vld [vmem:[#allocation2] sm:$0xf]
    %v222 = vld [vmem:[#allocation10] sm:$0xff]
    %v223 = vld [vmem:[#allocation10 + $0x8] sm:$0xff]
    %v224 = vld [vmem:[#allocation10 + $0x10] sm:$0xff]
    %v225 = vld [vmem:[#allocation10 + $0x18] sm:$0xff]
    %v227 = vsel %vm111, %v221, 0
    %v230 = vsel %vm111, %v222, 0
    %v233 = vsel %vm111, %v223, 0
    %v236 = vsel %vm111, %v224, 0
    %v239 = vsel %vm111, %v225, 0
    %241 = vmatprep.subr.mxu0 0.0
    %242 = vmatpush1.xpose.msra.mxu0 %v230
    %243 = vmatprep.subr.mxu0 0.0
    %244 = vmatpush1.xpose.msra.mxu0 %v233
    %245 = vmatprep.subr.mxu0 0.0
    %246 = vmatpush1.xpose.msra.mxu0 %v236
    %247 = vmatprep.subr.mxu0 0.0
    %248 = vmatpush1.xpose.msra.mxu0 %v239
    %249 = vmatprep.subr.mxu0 0.0
    %250 = vmatpush1.xpose.msra.mxu0 0.0
    %251 = vmatprep.subr.mxu0 0.0
    %252 = vmatpush1.xpose.msra.mxu0 0.0
    %253 = vmatprep.subr.mxu0 0.0
    %254 = vmatpush1.xpose.msra.mxu0 0.0
    %255 = vmatprep.subr.mxu0 0.0
    %256 = vmatpush1.xpose.msra.mxu0 0.0
    %257 = vmatprep.subr.mxu0 0.0
    %258 = vmatpush1.xpose.msra.mxu0 0.0
    %259 = vmatprep.subr.mxu0 0.0
    %260 = vmatpush1.xpose.msra.mxu0 0.0
    %261 = vmatprep.subr.mxu0 0.0
    %262 = vmatpush1.xpose.msra.mxu0 0.0
    %263 = vmatprep.subr.mxu0 0.0
    %264 = vmatpush1.xpose.msra.mxu0 0.0
    %265 = vmatprep.subr.mxu0 0.0
    %266 = vmatpush1.xpose.msra.mxu0 0.0
    %267 = vmatprep.subr.mxu0 0.0
    %268 = vmatpush1.xpose.msra.mxu0 0.0
    %269 = vmatprep.subr.mxu0 0.0
    %270 = vmatpush1.xpose.msra.mxu0 0.0
    %271 = vmatprep.subr.mxu0 0.0
    %272 = vmatpush1.xpose.msra.mxu0 0.0
    %273 = vmatprep.subr.mxu0 0.0
    %274 = vmatpush1.xpose.msra.mxu0 0.0
    %275 = vmatprep.subr.mxu0 0.0
    %276 = vmatpush1.xpose.msra.mxu0 0.0
    %277 = vmatprep.subr.mxu0 0.0
    %278 = vmatpush1.xpose.msra.mxu0 0.0
    %279 = vmatprep.subr.mxu0 0.0
    %280 = vmatpush1.xpose.msra.mxu0 0.0
    %281 = vmatprep.subr.mxu0 0.0
    %282 = vmatpush1.xpose.msra.mxu0 0.0
    %283 = vmatprep.subr.mxu0 0.0
    %284 = vmatpush1.xpose.msra.mxu0 0.0
    %285 = vmatprep.subr.mxu0 0.0
    %286 = vmatpush1.xpose.msra.mxu0 0.0
    %287 = vmatprep.subr.mxu0 0.0
    %288 = vmatpush1.xpose.msra.mxu0 0.0
    %289 = vmatprep.subr.mxu0 0.0
    %290 = vmatpush1.xpose.msra.mxu0 0.0
    %291 = vmatprep.subr.mxu0 0.0
    %292 = vmatpush1.xpose.msra.mxu0 0.0
    %293 = vmatprep.subr.mxu0 0.0
    %294 = vmatpush1.xpose.msra.mxu0 0.0
    %295 = vmatprep.subr.mxu0 0.0
    %296 = vmatpush1.xpose.msra.mxu0 0.0
    %297 = vmatprep.subr.mxu0 0.0
    %298 = vmatpush1.xpose.msra.mxu0 0.0
    %299 = vmatprep.subr.mxu0 0.0
    %300 = vmatpush1.xpose.msra.mxu0 0.0
    %301 = vmatprep.subr.mxu0 0.0
    %302 = vmatpush1.xpose.msra.mxu0 0.0
    %303 = vmatprep.subr.mxu0 0.0
    %304 = vmatpush1.xpose.msra.mxu0 0.0
    %305 = vmatprep.mubr.f32.mxu0 0.0
    %306 = vmatmul.mubr.f32.gmra.mrb[0].mxu0 %v227
    %v307 = vpop.f32.mrb[0].mxu0
    %v308 = vadd.f32 0.0, %v307
    %v309 = vpop.f32.mrb[0].mxu0
    %310 = vdwg.mxu0
    %v313 = vunpack.c.l.s4 1966171168
    %v314 = vunpack.c.0.s8 %v313
    %v315 = vlaneseq
    %v316 = vshrl.u32 %v315, 7
    %v317 = vsub.s32 %v314, %v316
    %v318 = vrot.slane %v308, %v317
    %v319 = vcombine.high %v318, %v318
    %v321 = vunpack.c.l.s4 1966171168
    %v322 = vunpack.c.0.s8 %v321
    %v323 = vlaneseq
    %v324 = vshrl.u32 %v323, 7
    %v325 = vsub.s32 %v322, %v324
    %v326 = vrot.slane %v318, %v325
    %v328 = vunpack.c.l.s4 1966171168
    %v329 = vunpack.c.0.s8 %v328
    %v330 = vlaneseq
    %v331 = vshrl.u32 %v330, 7
    %v332 = vsub.s32 %v329, %v331
    %v333 = vrot.slane %v319, %v332
    %v334 = vcombine.high %v326, %v326
    %v335 = vcombine.high %v333, %v333
    %v336 = vlaneseq
    %v337 = vshrl.u32 %v336, 7
    %v338 = vsub.s32 0, %v337
    %v339 = vrot.slane %v326, %v338
    %v340 = vlaneseq
    %v341 = vshrl.u32 %v340, 7
    %v342 = vsub.s32 0, %v341
    %v343 = vrot.slane %v333, %v342
    %v344 = vlaneseq
    %v345 = vshrl.u32 %v344, 7
    %v346 = vsub.s32 0, %v345
    %v347 = vrot.slane %v334, %v346
    %v348 = vlaneseq
    %v349 = vshrl.u32 %v348, 7
    %v350 = vsub.s32 0, %v349
    %v351 = vrot.slane %v335, %v350
    %v356 = vadd.f32 %v203, %v339
    %v357 = vadd.f32 %v208, %v343
    %v358 = vadd.f32 %v213, %v347
    %v359 = vadd.f32 %v218, %v351
    %v360 = vld [vmem:[#allocation8] sm:$0x1]
    %v362 = vlaneseq
    %v363 = vshrl.u32 %v362, 7
    %v364 = vsub.s32 0, %v363
    %v365 = vrot.slane %v360, %v364
    %v367 = vadd.f32 %v356, %v365
    %v368 = vadd.f32 %v357, %v365
    %v369 = vadd.f32 %v358, %v365
    %v370 = vadd.f32 %v359, %v365
    %v371 = vtanh.pop %v367
    %v372 = vtanh.pop %v368
    %v373 = vtanh.pop %v369
    %v374 = vtanh.pop %v370
    %v375 = vld [vmem:[#allocation11] sm:$0x1]
    %v377 = vlaneseq
    %v378 = vshrl.u32 %v377, 7
    %v379 = vsub.s32 0, %v378
    %v380 = vrot.slane %v375, %v379
    %v382 = vmul.f32 %v371, %v380
    %v383 = vmul.f32 %v372, %v380
    %v384 = vmul.f32 %v373, %v380
    %v385 = vmul.f32 %v374, %v380
    %v386 = vsel %vm111, %v382, 0.0
    %387 = vadd.xlane.f32.xlu0 %v386
    %v388 = vpop.xlane.xlu0 %387
    %v389 = vsel %vm111, %v383, 0.0
    %390 = vadd.xlane.f32.xlu0 %v389
    %v391 = vpop.xlane.xlu0 %390
    %v392 = vsel %vm111, %v384, 0.0
    %393 = vadd.xlane.f32.xlu0 %v392
    %v394 = vpop.xlane.xlu0 %393
    %v395 = vsel %vm111, %v385, 0.0
    %396 = vadd.xlane.f32.xlu0 %v395
    %v397 = vpop.xlane.xlu0 %396
    %v398 = vrot.slane %v388, 4
    %v399 = vmax.f32 %v388, %v398
    %v400 = vrot.slane %v399, 2
    %v401 = vmax.f32 %v399, %v400
    %v402 = vrot.slane %v401, 1
    %v403 = vmax.f32 %v401, %v402
    %v404 = vrot.slane %v391, 4
    %v405 = vmax.f32 %v391, %v404
    %v406 = vrot.slane %v405, 2
    %v407 = vmax.f32 %v405, %v406
    %v408 = vrot.slane %v407, 1
    %v409 = vmax.f32 %v407, %v408
    %v410 = vrot.slane %v394, 4
    %v411 = vmax.f32 %v394, %v410
    %v412 = vrot.slane %v411, 2
    %v413 = vmax.f32 %v411, %v412
    %v414 = vrot.slane %v413, 1
    %v415 = vmax.f32 %v413, %v414
    %v416 = vrot.slane %v397, 4
    %v417 = vmax.f32 %v397, %v416
    %v418 = vrot.slane %v417, 2
    %v419 = vmax.f32 %v417, %v418
    %v420 = vrot.slane %v419, 1
    %v421 = vmax.f32 %v419, %v420
    %v422 = vsub.f32 %v388, %v403
    %v423 = vsub.f32 %v391, %v409
    %v424 = vsub.f32 %v394, %v415
    %v425 = vsub.f32 %v397, %v421
    %v426 = vmul.f32 %v422, 1.442695
    %v427 = vpow.pop %v426
    %v428 = vmul.f32 %v423, 1.442695
    %v429 = vpow.pop %v428
    %v430 = vmul.f32 %v424, 1.442695
    %v431 = vpow.pop %v430
    %v432 = vmul.f32 %v425, 1.442695
    %v433 = vpow.pop %v432
    %v434 = vrot.slane %v427, 4
    %v435 = vadd.f32 %v427, %v434
    %v436 = vrot.slane %v435, 2
    %v437 = vadd.f32 %v435, %v436
    %v438 = vrot.slane %v437, 1
    %v439 = vadd.f32 %v437, %v438
    %v440 = vrot.slane %v429, 4
    %v441 = vadd.f32 %v429, %v440
    %v442 = vrot.slane %v441, 2
    %v443 = vadd.f32 %v441, %v442
    %v444 = vrot.slane %v443, 1
    %v445 = vadd.f32 %v443, %v444
    %v446 = vrot.slane %v431, 4
    %v447 = vadd.f32 %v431, %v446
    %v448 = vrot.slane %v447, 2
    %v449 = vadd.f32 %v447, %v448
    %v450 = vrot.slane %v449, 1
    %v451 = vadd.f32 %v449, %v450
    %v452 = vrot.slane %v433, 4
    %v453 = vadd.f32 %v433, %v452
    %v454 = vrot.slane %v453, 2
    %v455 = vadd.f32 %v453, %v454
    %v456 = vrot.slane %v455, 1
    %v457 = vadd.f32 %v455, %v456
    %v458 = vrcp.pop %v439
    %v459 = vrcp.pop %v445
    %v460 = vrcp.pop %v451
    %v461 = vrcp.pop %v457
    %v462 = vmul.f32 %v427, %v458
    %v463 = vmul.f32 %v429, %v459
    %v464 = vmul.f32 %v431, %v460
    %v465 = vmul.f32 %v433, %v461
    %v466 = vmul.f32 %v462, %v103
    %v467 = vmul.f32 %v463, %v104
    %v468 = vmul.f32 %v464, %v105
    %v469 = vmul.f32 %v465, %v106
    %v470 = vsel %vm111, %v466, 0.0
    %v471 = vrot.slane %v470, 4
    %v472 = vadd.f32 %v470, %v471
    %v473 = vrot.slane %v472, 2
    %v474 = vadd.f32 %v472, %v473
    %v475 = vrot.slane %v474, 1
    %v476 = vadd.f32 %v474, %v475
    %v477 = vsel %vm111, %v467, 0.0
    %v478 = vrot.slane %v477, 4
    %v479 = vadd.f32 %v477, %v478
    %v480 = vrot.slane %v479, 2
    %v481 = vadd.f32 %v479, %v480
    %v482 = vrot.slane %v481, 1
    %v483 = vadd.f32 %v481, %v482
    %v484 = vsel %vm111, %v468, 0.0
    %v485 = vrot.slane %v484, 4
    %v486 = vadd.f32 %v484, %v485
    %v487 = vrot.slane %v486, 2
    %v488 = vadd.f32 %v486, %v487
    %v489 = vrot.slane %v488, 1
    %v490 = vadd.f32 %v488, %v489
    %v491 = vsel %vm111, %v469, 0.0
    %v492 = vrot.slane %v491, 4
    %v493 = vadd.f32 %v491, %v492
    %v494 = vrot.slane %v493, 2
    %v495 = vadd.f32 %v493, %v494
    %v496 = vrot.slane %v495, 1
    %v497 = vadd.f32 %v495, %v496
    %vm498 = vcmask 253952
    %499 = vst.msk [vmem:[#allocation13] sm:$0x1] %vm498, %v476
    %500 = vst.msk [vmem:[#allocation13 + $0x1] sm:$0x1] %vm498, %v483
    %501 = vst.msk [vmem:[#allocation13 + $0x2] sm:$0x1] %vm498, %v490
    %502 = vst.msk [vmem:[#allocation13 + $0x3] sm:$0x1] %vm498, %v497
    %vm503 = vcmask 7168
    %504 = vst.msk [vmem:[#allocation14] sm:$0xff] %vm503, %v462
    %505 = vst.msk [vmem:[#allocation14 + $0x8] sm:$0xff] %vm503, %v463
    %506 = vst.msk [vmem:[#allocation14 + $0x10] sm:$0xff] %vm503, %v464
    %507 = vst.msk [vmem:[#allocation14 + $0x18] sm:$0xff] %vm503, %v465
    // Predicated region
    $region50: #{tpu_custom_call.1} parent=1 // pred_check
      _
    $region51: #{tpu_custom_call.1} parent=1 // pred_check_branch
      %509 = sbr.rel (0) target = $region53
    $region52: #{tpu_custom_call.1} parent=1 // pred_region
      %s511 = ssub.s32 64, 64
      %512 = vsyncadd [#allocation4], %s511
      %s513 = sshll.u32 [#allocation13], 4
      %s514 = int_to_ptr.vmem [resolvable:$true] %s513
      %519 = dma.vmem_to_hbm [thread:$0]  %s514, 64, %s6, [#allocation4], 16, 16, 1
    $region53: #{tpu_custom_call.1} parent=1 // pred_fallthru
      _
    // Predicated region
    $region54: #{tpu_custom_call.1} parent=1 // pred_check
      _
    $region55: #{tpu_custom_call.1} parent=1 // pred_check_branch
      %521 = sbr.rel (0) target = $region57
    $region56: #{tpu_custom_call.1} parent=1 // pred_region
      %s523 = ssub.s32 512, 512
      %524 = vsyncadd [#allocation15], %s523
      %s525 = sshll.u32 [#allocation14], 4
      %s526 = int_to_ptr.vmem [resolvable:$true] %s525
      %531 = dma.vmem_to_hbm [thread:$0]  %s526, 512, %s7, [#allocation15], 128, 128, 8
    $region57: #{tpu_custom_call.1} parent=1 // pred_fallthru
      _
    // Predicated region
    $region58: #{tpu_custom_call.1} parent=1 // pred_check
      _
    $region59: #{tpu_custom_call.1} parent=1 // pred_check_branch
      %533 = sbr.rel (0) target = $region61
    $region60: #{tpu_custom_call.1} parent=1 // pred_region
      %534 = dma.done [#allocation4], 64
    $region61: #{tpu_custom_call.1} parent=1 // pred_fallthru
      _
    // Predicated region
    $region62: #{tpu_custom_call.1} parent=1 // pred_check
      _
    $region63: #{tpu_custom_call.1} parent=1 // pred_check_branch
      %536 = sbr.rel (0) target = $region65
    $region64: #{tpu_custom_call.1} parent=1 // pred_region
      %537 = dma.done [#allocation15], 512
    $region65: #{tpu_custom_call.1} parent=1 // pred_fallthru
      _
    %538 = vsyncpa [#allocation3], 1
    %539 = vsyncpa [#allocation6], 1
    %540 = vsyncpa [#allocation9], 1
    %541 = vsyncpa [#allocation12], 1
    %542 = vsyncpa [#allocation4], 1
    %543 = vsyncpa [#allocation15], 1

</llo_original>
